<compile_context>
chip_gen: v5e
topology: v5e:2x2
jax: 0.10.0
libtpu: 0.0.40
codegen_flags: <defaults>
</compile_context>

<pallas_src>
import functools

import jax
import jax.numpy as jnp
from jax import lax
from jax.experimental import pallas as pl
from jax.experimental.pallas import tpu as pltpu


def _round_up(x, m):
    return ((x + m - 1) // m) * m


# ----------------------------------------------------------------------------
# Kernel: processes one (Tc, Bc) chunk of the sequence for ALL layers.
# refs layout: x, m, [w_ih, w_hh, bias] * n_layers, y, h_out, c_out,
#              gx_scratch, act_scratch, h_state, c_state
# ----------------------------------------------------------------------------
def _encoder_kernel(n_layers, hidden_dim, x_ref, m_ref, *refs):
    H = hidden_dim
    w_refs = refs[: 3 * n_layers]
    y_ref, hout_ref, cout_ref = refs[3 * n_layers: 3 * n_layers + 3]
    gx_ref, act_ref, hs_ref, cs_ref = refs[3 * n_layers + 3:]

    Tc, Bc, _ = x_ref.shape
    ti = pl.program_id(1)

    # Fresh recurrent state at the start of each batch block's time sweep.
    @pl.when(ti == 0)
    def _():
        hs_ref[...] = jnp.zeros_like(hs_ref)
        cs_ref[...] = jnp.zeros_like(cs_ref)

    cur = x_ref[...]  # (Tc, Bc, d_in) layer input for the current chunk
    for l in range(n_layers):
        is_last = l == n_layers - 1
        wih = w_refs[3 * l][...]        # (d_in, 4H)
        whh = w_refs[3 * l + 1][...]    # (H, 4H)
        bias = w_refs[3 * l + 2][...]   # (1, 4H)
        d_in = wih.shape[0]

        # Hoisted input projection (+ bias) for the whole chunk: one large,
        # MXU-friendly matmul instead of Tc tiny per-step matmuls.
        gx = jnp.dot(cur.reshape(Tc * Bc, d_in), wih,
                     preferred_element_type=jnp.float32) + bias
        gx_ref[...] = gx.reshape(Tc, Bc, 4 * H)

        out_ref = y_ref if is_last else act_ref

        def step(t, carry, whh=whh, out_ref=out_ref):
            h, c = carry
            # Only the recurrent contribution is on the serial path.
            g = gx_ref[t] + jnp.dot(h, whh, preferred_element_type=jnp.float32)
            # PyTorch gate order: i, f, g, o.
            # NOTE: H=32 slices the 128-lane axis below lane granularity; for
            # production configs make H a multiple of 128 so gate slices are
            # lane-aligned.
            i_g = jax.nn.sigmoid(g[:, 0:H])
            f_g = jax.nn.sigmoid(g[:, H:2 * H])
            g_g = jnp.tanh(g[:, 2 * H:3 * H])
            o_g = jax.nn.sigmoid(g[:, 3 * H:4 * H])
            c_new = f_g * c + i_g * g_g
            h_new = o_g * jnp.tanh(c_new)
            m_t = m_ref[t] > 0.5  # (Bc, 1) bool: valid (non-padded) step?
            # Packed-sequence semantics: zero output and frozen state at
            # padded steps (single vselect each instead of mul/add masking).
            out_ref[t] = jnp.where(m_t, h_new, 0.0).astype(out_ref.dtype)
            return (jnp.where(m_t, h_new, h), jnp.where(m_t, c_new, c))

        h_f, c_f = lax.fori_loop(0, Tc, step, (hs_ref[l], cs_ref[l]))
        hs_ref[l] = h_f
        cs_ref[l] = c_f
        if not is_last:
            cur = act_ref[...]  # next layer's input stays in VMEM

    # Publish the (per-batch-block) final states; the resident output block is
    # written back to HBM when the batch block changes / the grid finishes.
    hout_ref[...] = hs_ref[...]
    cout_ref[...] = cs_ref[...]


# ----------------------------------------------------------------------------
# Wrapper: pads B to a sublane multiple and T to a chunk multiple, builds the
# grid/BlockSpecs, and strips the padding from the results.
# ----------------------------------------------------------------------------
def encoder_forward_pallas(x, mask, params, *, tc=32, batch_chunks=1):
    T, B, D = x.shape
    L = len(params)
    H = params[0][1].shape[1]  # w_hh: (4H, H)
    f32 = jnp.float32

    B_pad = max(8, _round_up(B, 8))
    if batch_chunks < 1 or B_pad % (8 * batch_chunks) != 0:
        batch_chunks = 1  # on v7x, batch_chunks=2 shards the recurrence over 2 TCs
    Bc = B_pad // batch_chunks
    tc = min(tc, _round_up(T, 8))
    T_pad = _round_up(T, tc)

    x_p = jnp.zeros((T_pad, B_pad, D), f32).at[:T, :B, :].set(x.astype(f32))
    m_p = jnp.zeros((T_pad, B_pad, 1), f32).at[:T, :B, 0].set(
        mask.T.astype(f32))

    w_args, w_specs = [], []
    for (w_ih, w_hh, b_ih, b_hh) in params:
        wih_t = jnp.asarray(w_ih, f32).T                       # (d_in, 4H)
        whh_t = jnp.asarray(w_hh, f32).T                       # (H, 4H)
        bias = (jnp.asarray(b_ih, f32) + jnp.asarray(b_hh, f32)).reshape(1, 4 * H)
        w_args += [wih_t, whh_t, bias]
        # Weights/bias resident across the whole grid (constant index_map).
        w_specs += [
            pl.BlockSpec(wih_t.shape, lambda bi, ti: (0, 0)),
            pl.BlockSpec(whh_t.shape, lambda bi, ti: (0, 0)),
            pl.BlockSpec(bias.shape, lambda bi, ti: (0, 0)),
        ]

    grid = (B_pad // Bc, T_pad // tc)
    grid_spec = pltpu.PrefetchScalarGridSpec(
        num_scalar_prefetch=0,
        grid=grid,
        in_specs=[
            pl.BlockSpec((tc, Bc, D), lambda bi, ti: (ti, bi, 0)),
            pl.BlockSpec((tc, Bc, 1), lambda bi, ti: (ti, bi, 0)),
        ] + w_specs,
        out_specs=(
            pl.BlockSpec((tc, Bc, H), lambda bi, ti: (ti, bi, 0)),
            pl.BlockSpec((L, Bc, H), lambda bi, ti: (0, bi, 0)),
            pl.BlockSpec((L, Bc, H), lambda bi, ti: (0, bi, 0)),
        ),
        scratch_shapes=[
            pltpu.VMEM((tc, Bc, 4 * H), f32),   # hoisted per-chunk gate inputs
            pltpu.VMEM((tc, Bc, H), f32),       # inter-layer chunk activations
            pltpu.VMEM((L, Bc, H), f32),        # carried hidden state
            pltpu.VMEM((L, Bc, H), f32),        # carried cell state
        ],
    )
    out_shape = (
        jax.ShapeDtypeStruct((T_pad, B_pad, H), f32),
        jax.ShapeDtypeStruct((L, B_pad, H), f32),
        jax.ShapeDtypeStruct((L, B_pad, H), f32),
    )
    y, h, c = pl.pallas_call(
        functools.partial(_encoder_kernel, L, H),
        grid_spec=grid_spec,
        out_shape=out_shape,
        compiler_params=pltpu.CompilerParams(
            dimension_semantics=("parallel", "arbitrary"),
            vmem_limit_bytes=32 * 1024 * 1024,
        ),
    )(x_p, m_p, *w_args)
    return y[:T, :B], h[:, :B], c[:, :B]


# ----------------------------------------------------------------------------
# Encoder: multi-layer LSTM over packed (length-masked) sequences.
# ----------------------------------------------------------------------------
class Encoder:
    def __init__(self, input_dim, hidden_dim, n_layers, p, key):
        self.input_dim = input_dim
        self.hidden_dim = hidden_dim
        self.n_layers = n_layers
        self.p = p  # TODO(synk): inter-layer dropout only applies in training mode; inference semantics (identity) implemented here.
        k = 1.0 / jnp.sqrt(hidden_dim)
        self.params = []
        for l in range(n_layers):
            d_in = input_dim if l == 0 else hidden_dim
            key, k1, k2, k3, k4 = jax.random.split(key, 5)
            w_ih = jax.random.uniform(k1, (4 * hidden_dim, d_in), jnp.float32, -k, k)
            w_hh = jax.random.uniform(k2, (4 * hidden_dim, hidden_dim), jnp.float32, -k, k)
            b_ih = jax.random.uniform(k3, (4 * hidden_dim,), jnp.float32, -k, k)
            b_hh = jax.random.uniform(k4, (4 * hidden_dim,), jnp.float32, -k, k)
            self.params.append((w_ih, w_hh, b_ih, b_hh))

    def __call__(self, inp, mask):
        # t_max depends only on the *input* mask (not on kernel results), so
        # computing it here does not stall async dispatch of the kernel.
        t_max = int(jax.device_get(jnp.max(jnp.sum(mask.astype(jnp.int32), axis=1))))
        y, h, c = encoder_forward_pallas(inp, mask, self.params)
        # pad_packed_sequence pads/truncates to max(lengths) in the batch.
        return y[:t_max], (h, c)


# ----------------------------------------------------------------------------
# Pure-JAX reference (lax.scan) for correctness checking.
# ----------------------------------------------------------------------------
def encoder_ref(inp, mask, params):
    T, B, _ = inp.shape
    m = mask.T.reshape(T, B, 1).astype(jnp.float32)
    layer_in = inp.astype(jnp.float32)
    hs, cs = [], []
    for (w_ih, w_hh, b_ih, b_hh) in params:
        H = w_hh.shape[1]

        def step(carry, xm, w_ih=w_ih, w_hh=w_hh, b_ih=b_ih, b_hh=b_hh, H=H):
            h, c = carry
            x_t, m_t = xm
            gates = (jnp.dot(x_t, w_ih.T, preferred_element_type=jnp.float32)
                     + jnp.dot(h, w_hh.T, preferred_element_type=jnp.float32)
                     + b_ih + b_hh)
            i_g = jax.nn.sigmoid(gates[:, :H])
            f_g = jax.nn.sigmoid(gates[:, H:2 * H])
            g_g = jnp.tanh(gates[:, 2 * H:3 * H])
            o_g = jax.nn.sigmoid(gates[:, 3 * H:])
            c_new = f_g * c + i_g * g_g
            h_new = o_g * jnp.tanh(c_new)
            h2 = m_t * h_new + (1 - m_t) * h
            c2 = m_t * c_new + (1 - m_t) * c
            return (h2, c2), m_t * h_new

        init = (jnp.zeros((B, H), jnp.float32), jnp.zeros((B, H), jnp.float32))
        (h_f, c_f), ys = lax.scan(step, init, (layer_in, m))
        hs.append(h_f)
        cs.append(c_f)
        layer_in = ys
    t_max = int(jax.device_get(jnp.max(jnp.sum(mask, axis=1))))
    return layer_in[:t_max], (jnp.stack(hs), jnp.stack(cs))


if __name__ == "__main__":
    key = jax.random.PRNGKey(0)
    input_dim, hidden_dim, n_layers, p = 16, 32, 2, 0.1
    T, B = 10, 4

    key, k_x, k_p = jax.random.split(key, 3)
    x = jax.random.normal(k_x, (T, B, input_dim), jnp.float32)
    lengths = jnp.array([8, 6, 4, 2], jnp.int32)
    mask = (jnp.arange(T)[None, :] < lengths[:, None]).astype(jnp.int32)  # (B, T)

    enc = Encoder(input_dim, hidden_dim, n_layers, p, k_p)
    output, (hidden, cell) = enc(x, mask)
    output = jax.block_until_ready(output)
    hidden = jax.block_until_ready(hidden)
    cell = jax.block_until_ready(cell)

    # Check against pure-JAX reference.
    ref_out, (ref_h, ref_c) = encoder_ref(x, mask, enc.params)
    assert output.shape == ref_out.shape == (int(lengths.max()), B, hidden_dim)
    assert hidden.shape == cell.shape == (n_layers, B, hidden_dim)
    assert jnp.allclose(output, ref_out, atol=2e-3, rtol=2e-3)
    assert jnp.allclose(hidden, ref_h, atol=2e-3, rtol=2e-3)
    assert jnp.allclose(cell, ref_c, atol=2e-3, rtol=2e-3)

    print("KERNEL_OK")
</pallas_src>

<mosaic_0001>
module attributes {stable_mosaic.version = 11 : i64} {
  func.func @_encoder_kernel(%arg0: i32, %arg1: i32, %arg2: memref<16x8x16xf32, #tpu.memory_space<vmem>>, %arg3: memref<16x8x1xf32, #tpu.memory_space<vmem>>, %arg4: memref<16x128xf32, #tpu.memory_space<vmem>>, %arg5: memref<32x128xf32, #tpu.memory_space<vmem>>, %arg6: memref<1x128xf32, #tpu.memory_space<vmem>>, %arg7: memref<32x128xf32, #tpu.memory_space<vmem>>, %arg8: memref<32x128xf32, #tpu.memory_space<vmem>>, %arg9: memref<1x128xf32, #tpu.memory_space<vmem>>, %arg10: memref<16x8x32xf32, #tpu.memory_space<vmem>>, %arg11: memref<2x8x32xf32, #tpu.memory_space<vmem>>, %arg12: memref<2x8x32xf32, #tpu.memory_space<vmem>>, %arg13: memref<16x8x128xf32, #tpu.memory_space<vmem>>, %arg14: memref<16x8x32xf32, #tpu.memory_space<vmem>>, %arg15: memref<2x8x32xf32, #tpu.memory_space<vmem>>, %arg16: memref<2x8x32xf32, #tpu.memory_space<vmem>>) attributes {dimension_semantics = [#tpu.dimension_semantics<parallel>, #tpu.dimension_semantics<arbitrary>], iteration_bounds = array<i64: 1, 1>, scalar_prefetch = 0 : i64, scratch_operands = 4 : i64, tpu.core_type = #tpu.core_type<tc>, window_params = [{transform_indices = @transform_0, window_bounds = array<i64: 16, 8, 16>}, {transform_indices = @transform_1, window_bounds = array<i64: 16, 8, 1>}, {pipeline_mode = #tpu.pipeline_mode<synchronous>, transform_indices = @transform_2, window_bounds = array<i64: 16, 128>}, {pipeline_mode = #tpu.pipeline_mode<synchronous>, transform_indices = @transform_3, window_bounds = array<i64: 32, 128>}, {pipeline_mode = #tpu.pipeline_mode<synchronous>, transform_indices = @transform_4, window_bounds = array<i64: 1, 128>}, {pipeline_mode = #tpu.pipeline_mode<synchronous>, transform_indices = @transform_5, window_bounds = array<i64: 32, 128>}, {pipeline_mode = #tpu.pipeline_mode<synchronous>, transform_indices = @transform_6, window_bounds = array<i64: 32, 128>}, {pipeline_mode = #tpu.pipeline_mode<synchronous>, transform_indices = @transform_7, window_bounds = array<i64: 1, 128>}, {transform_indices = @transform_8, window_bounds = array<i64: 16, 8, 32>}, {transform_indices = @transform_9, window_bounds = array<i64: 2, 8, 32>}, {transform_indices = @transform_10, window_bounds = array<i64: 2, 8, 32>}]} {
    %c0_i32 = arith.constant 0 : i32
    %0 = arith.cmpi eq, %arg1, %c0_i32 : i32
    %1 = arith.extui %0 : i1 to i32
    %c0_i32_0 = arith.constant 0 : i32
    %2 = arith.cmpi ne, %1, %c0_i32_0 : i32
    scf.if %2 {
      %cst_66 = arith.constant 0.000000e+00 : f32
      %51 = vector.broadcast %cst_66 : f32 to vector<2x8x32xf32>
      %c0_67 = arith.constant 0 : index
      %c0_68 = arith.constant 0 : index
      %c0_69 = arith.constant 0 : index
      %52 = vector.load %arg15[%c0_67, %c0_68, %c0_69] : memref<2x8x32xf32, #tpu.memory_space<vmem>>, vector<2x8x32xf32>
      tpu.vector_store %arg15[%c0_67, %c0_68, %c0_69], %51 {strides = array<i32>} : memref<2x8x32xf32, #tpu.memory_space<vmem>>, vector<2x8x32xf32>,
      %cst_70 = arith.constant 0.000000e+00 : f32
      %53 = vector.broadcast %cst_70 : f32 to vector<2x8x32xf32>
      %c0_71 = arith.constant 0 : index
      %c0_72 = arith.constant 0 : index
      %c0_73 = arith.constant 0 : index
      %54 = vector.load %arg16[%c0_71, %c0_72, %c0_73] : memref<2x8x32xf32, #tpu.memory_space<vmem>>, vector<2x8x32xf32>
      tpu.vector_store %arg16[%c0_71, %c0_72, %c0_73], %53 {strides = array<i32>} : memref<2x8x32xf32, #tpu.memory_space<vmem>>, vector<2x8x32xf32>,
    } else {
    }
    %c0 = arith.constant 0 : index
    %c0_1 = arith.constant 0 : index
    %c0_2 = arith.constant 0 : index
    %3 = vector.load %arg2[%c0, %c0_1, %c0_2] : memref<16x8x16xf32, #tpu.memory_space<vmem>>, vector<16x8x16xf32>
    %c0_3 = arith.constant 0 : index
    %c0_4 = arith.constant 0 : index
    %4 = vector.load %arg4[%c0_3, %c0_4] : memref<16x128xf32, #tpu.memory_space<vmem>>, vector<16x128xf32>
    %c0_5 = arith.constant 0 : index
    %c0_6 = arith.constant 0 : index
    %5 = vector.load %arg5[%c0_5, %c0_6] : memref<32x128xf32, #tpu.memory_space<vmem>>, vector<32x128xf32>
    %c0_7 = arith.constant 0 : index
    %c0_8 = arith.constant 0 : index
    %6 = vector.load %arg6[%c0_7, %c0_8] : memref<1x128xf32, #tpu.memory_space<vmem>>, vector<1x128xf32>
    %7 = vector.shape_cast %3 : vector<16x8x16xf32> to vector<128x16xf32>
    %cst = arith.constant dense<0.000000e+00> : vector<128x128xf32>
    %8 = tpu.matmul %7, %4, %cst {dimension_numbers = #tpu.dot_dimension_numbers<[1], [0], [0], [1], [0, 0, 1, 1], [], []>} : vector<128x16xf32>, vector<16x128xf32>, vector<128x128xf32> -> vector<128x128xf32>
    %9 = vector.broadcast %6 : vector<1x128xf32> to vector<128x128xf32>
    %10 = arith.addf %8, %9 : vector<128x128xf32>
    %11 = vector.shape_cast %10 : vector<128x128xf32> to vector<16x8x128xf32>
    %c0_9 = arith.constant 0 : index
    %c0_10 = arith.constant 0 : index
    %c0_11 = arith.constant 0 : index
    %12 = vector.load %arg13[%c0_9, %c0_10, %c0_11] : memref<16x8x128xf32, #tpu.memory_space<vmem>>, vector<16x8x128xf32>
    tpu.vector_store %arg13[%c0_9, %c0_10, %c0_11], %11 {strides = array<i32>} : memref<16x8x128xf32, #tpu.memory_space<vmem>>, vector<16x8x128xf32>,
    %c0_12 = arith.constant 0 : index
    %c0_13 = arith.constant 0 : index
    %c0_14 = arith.constant 0 : index
    %13 = vector.load %arg15[%c0_12, %c0_13, %c0_14] : memref<2x8x32xf32, #tpu.memory_space<vmem>>, vector<1x8x32xf32>
    %14 = vector.shape_cast %13 : vector<1x8x32xf32> to vector<8x32xf32>
    %c0_15 = arith.constant 0 : index
    %c0_16 = arith.constant 0 : index
    %c0_17 = arith.constant 0 : index
    %15 = vector.load %arg16[%c0_15, %c0_16, %c0_17] : memref<2x8x32xf32, #tpu.memory_space<vmem>>, vector<1x8x32xf32>
    %16 = vector.shape_cast %15 : vector<1x8x32xf32> to vector<8x32xf32>
    %c0_i32_18 = arith.constant 0 : i32
    %c16_i32 = arith.constant 16 : i32
    %17 = arith.addi %c0_i32_18, %c16_i32 : i32
    %c1_i32 = arith.constant 1 : i32
    %18:2 = scf.for %arg17 = %c0_i32_18 to %17 step %c1_i32 iter_args(%arg18 = %14, %arg19 = %16) -> (vector<8x32xf32>, vector<8x32xf32>)  : i32 {
      %51 = arith.index_cast %arg17 : i32 to index
      %c0_66 = arith.constant 0 : index
      %c0_67 = arith.constant 0 : index
      %52 = vector.load %arg13[%51, %c0_66, %c0_67] : memref<16x8x128xf32, #tpu.memory_space<vmem>>, vector<1x8x128xf32>
      %53 = vector.shape_cast %52 : vector<1x8x128xf32> to vector<8x128xf32>
      %cst_68 = arith.constant dense<0.000000e+00> : vector<8x128xf32>
      %54 = tpu.matmul %arg18, %5, %cst_68 {dimension_numbers = #tpu.dot_dimension_numbers<[1], [0], [0], [1], [0, 0, 1, 1], [], []>} : vector<8x32xf32>, vector<32x128xf32>, vector<8x128xf32> -> vector<8x128xf32>
      %55 = arith.addf %53, %54 : vector<8x128xf32>
      %56 = vector.extract_strided_slice %55 {offsets = [0, 0], sizes = [8, 32], strides = [1, 1]} : vector<8x128xf32> to vector<8x32xf32>
      %57 = arith.negf %56 : vector<8x32xf32>
      %58 = math.exp %57 : vector<8x32xf32>
      %cst_69 = arith.constant 1.000000e+00 : f32
      %59 = vector.broadcast %cst_69 : f32 to vector<8x32xf32>
      %60 = arith.addf %59, %58 : vector<8x32xf32>
      %61 = arith.divf %59, %60 : vector<8x32xf32>
      %62 = vector.extract_strided_slice %55 {offsets = [0, 32], sizes = [8, 32], strides = [1, 1]} : vector<8x128xf32> to vector<8x32xf32>
      %63 = arith.negf %62 : vector<8x32xf32>
      %64 = math.exp %63 : vector<8x32xf32>
      %cst_70 = arith.constant 1.000000e+00 : f32
      %65 = vector.broadcast %cst_70 : f32 to vector<8x32xf32>
      %66 = arith.addf %65, %64 : vector<8x32xf32>
      %67 = arith.divf %65, %66 : vector<8x32xf32>
      %68 = vector.extract_strided_slice %55 {offsets = [0, 64], sizes = [8, 32], strides = [1, 1]} : vector<8x128xf32> to vector<8x32xf32>
      %69 = math.tanh %68 : vector<8x32xf32>
      %70 = vector.extract_strided_slice %55 {offsets = [0, 96], sizes = [8, 32], strides = [1, 1]} : vector<8x128xf32> to vector<8x32xf32>
      %71 = arith.negf %70 : vector<8x32xf32>
      %72 = math.exp %71 : vector<8x32xf32>
      %cst_71 = arith.constant 1.000000e+00 : f32
      %73 = vector.broadcast %cst_71 : f32 to vector<8x32xf32>
      %74 = arith.addf %73, %72 : vector<8x32xf32>
      %75 = arith.divf %73, %74 : vector<8x32xf32>
      %76 = arith.mulf %67, %arg19 : vector<8x32xf32>
      %77 = arith.mulf %61, %69 : vector<8x32xf32>
      %78 = arith.addf %76, %77 : vector<8x32xf32>
      %79 = math.tanh %78 : vector<8x32xf32>
      %80 = arith.mulf %75, %79 : vector<8x32xf32>
      %81 = arith.index_cast %arg17 : i32 to index
      %c0_72 = arith.constant 0 : index
      %c0_73 = arith.constant 0 : index
      %82 = vector.load %arg3[%81, %c0_72, %c0_73] : memref<16x8x1xf32, #tpu.memory_space<vmem>>, vector<1x8x1xf32>
      %83 = vector.shape_cast %82 : vector<1x8x1xf32> to vector<8x1xf32>
      %cst_74 = arith.constant 5.000000e-01 : f32
      %84 = vector.broadcast %cst_74 : f32 to vector<8x1xf32>
      %85 = arith.cmpf ogt, %83, %84 : vector<8x1xf32>
      %cst_75 = arith.constant 0.000000e+00 : f32
      %86 = vector.shape_cast %85 : vector<8x1xi1> to vector<8x1xi1>
      %87 = vector.broadcast %86 : vector<8x1xi1> to vector<8x32xi1>
      %88 = vector.broadcast %cst_75 : f32 to vector<8x32xf32>
      %89 = arith.select %87, %80, %88 : vector<8x32xi1>, vector<8x32xf32>
      %90 = arith.index_cast %arg17 : i32 to index
      %c0_76 = arith.constant 0 : index
      %c0_77 = arith.constant 0 : index
      %91 = vector.load %arg14[%90, %c0_76, %c0_77] : memref<16x8x32xf32, #tpu.memory_space<vmem>>, vector<1x8x32xf32>
      %92 = vector.shape_cast %91 : vector<1x8x32xf32> to vector<8x32xf32>
      %93 = vector.shape_cast %89 : vector<8x32xf32> to vector<1x8x32xf32>
      tpu.vector_store %arg14[%90, %c0_76, %c0_77], %93 {strides = array<i32>} : memref<16x8x32xf32, #tpu.memory_space<vmem>>, vector<1x8x32xf32>,
      %94 = vector.shape_cast %85 : vector<8x1xi1> to vector<8x1xi1>
      %95 = vector.broadcast %94 : vector<8x1xi1> to vector<8x32xi1>
      %96 = arith.select %95, %80, %arg18 : vector<8x32xi1>, vector<8x32xf32>
      %97 = vector.shape_cast %85 : vector<8x1xi1> to vector<8x1xi1>
      %98 = vector.broadcast %97 : vector<8x1xi1> to vector<8x32xi1>
      %99 = arith.select %98, %78, %arg19 : vector<8x32xi1>, vector<8x32xf32>
      scf.yield %96, %99 : vector<8x32xf32>, vector<8x32xf32>
    }
    %c16_i32_19 = arith.constant 16 : i32
    %c0_20 = arith.constant 0 : index
    %c0_21 = arith.constant 0 : index
    %c0_22 = arith.constant 0 : index
    %19 = vector.load %arg15[%c0_20, %c0_21, %c0_22] : memref<2x8x32xf32, #tpu.memory_space<vmem>>, vector<1x8x32xf32>
    %20 = vector.shape_cast %19 : vector<1x8x32xf32> to vector<8x32xf32>
    %21 = vector.shape_cast %18#0 : vector<8x32xf32> to vector<1x8x32xf32>
    tpu.vector_store %arg15[%c0_20, %c0_21, %c0_22], %21 {strides = array<i32>} : memref<2x8x32xf32, #tpu.memory_space<vmem>>, vector<1x8x32xf32>,
    %c0_23 = arith.constant 0 : index
    %c0_24 = arith.constant 0 : index
    %c0_25 = arith.constant 0 : index
    %22 = vector.load %arg16[%c0_23, %c0_24, %c0_25] : memref<2x8x32xf32, #tpu.memory_space<vmem>>, vector<1x8x32xf32>
    %23 = vector.shape_cast %22 : vector<1x8x32xf32> to vector<8x32xf32>
    %24 = vector.shape_cast %18#1 : vector<8x32xf32> to vector<1x8x32xf32>
    tpu.vector_store %arg16[%c0_23, %c0_24, %c0_25], %24 {strides = array<i32>} : memref<2x8x32xf32, #tpu.memory_space<vmem>>, vector<1x8x32xf32>,
    %c0_26 = arith.constant 0 : index
    %c0_27 = arith.constant 0 : index
    %c0_28 = arith.constant 0 : index
    %25 = vector.load %arg14[%c0_26, %c0_27, %c0_28] : memref<16x8x32xf32, #tpu.memory_space<vmem>>, vector<16x8x32xf32>
    %c0_29 = arith.constant 0 : index
    %c0_30 = arith.constant 0 : index
    %26 = vector.load %arg7[%c0_29, %c0_30] : memref<32x128xf32, #tpu.memory_space<vmem>>, vector<32x128xf32>
    %c0_31 = arith.constant 0 : index
    %c0_32 = arith.constant 0 : index
    %27 = vector.load %arg8[%c0_31, %c0_32] : memref<32x128xf32, #tpu.memory_space<vmem>>, vector<32x128xf32>
    %c0_33 = arith.constant 0 : index
    %c0_34 = arith.constant 0 : index
    %28 = vector.load %arg9[%c0_33, %c0_34] : memref<1x128xf32, #tpu.memory_space<vmem>>, vector<1x128xf32>
    %29 = vector.shape_cast %25 : vector<16x8x32xf32> to vector<128x32xf32>
    %cst_35 = arith.constant dense<0.000000e+00> : vector<128x128xf32>
    %30 = tpu.matmul %29, %26, %cst_35 {dimension_numbers = #tpu.dot_dimension_numbers<[1], [0], [0], [1], [0, 0, 1, 1], [], []>} : vector<128x32xf32>, vector<32x128xf32>, vector<128x128xf32> -> vector<128x128xf32>
    %31 = vector.broadcast %28 : vector<1x128xf32> to vector<128x128xf32>
    %32 = arith.addf %30, %31 : vector<128x128xf32>
    %33 = vector.shape_cast %32 : vector<128x128xf32> to vector<16x8x128xf32>
    %c0_36 = arith.constant 0 : index
    %c0_37 = arith.constant 0 : index
    %c0_38 = arith.constant 0 : index
    %34 = vector.load %arg13[%c0_36, %c0_37, %c0_38] : memref<16x8x128xf32, #tpu.memory_space<vmem>>, vector<16x8x128xf32>
    tpu.vector_store %arg13[%c0_36, %c0_37, %c0_38], %33 {strides = array<i32>} : memref<16x8x128xf32, #tpu.memory_space<vmem>>, vector<16x8x128xf32>,
    %c1 = arith.constant 1 : index
    %c0_39 = arith.constant 0 : index
    %c0_40 = arith.constant 0 : index
    %35 = vector.load %arg15[%c1, %c0_39, %c0_40] : memref<2x8x32xf32, #tpu.memory_space<vmem>>, vector<1x8x32xf32>
    %36 = vector.shape_cast %35 : vector<1x8x32xf32> to vector<8x32xf32>
    %c1_41 = arith.constant 1 : index
    %c0_42 = arith.constant 0 : index
    %c0_43 = arith.constant 0 : index
    %37 = vector.load %arg16[%c1_41, %c0_42, %c0_43] : memref<2x8x32xf32, #tpu.memory_space<vmem>>, vector<1x8x32xf32>
    %38 = vector.shape_cast %37 : vector<1x8x32xf32> to vector<8x32xf32>
    %c0_i32_44 = arith.constant 0 : i32
    %c16_i32_45 = arith.constant 16 : i32
    %39 = arith.addi %c0_i32_44, %c16_i32_45 : i32
    %c1_i32_46 = arith.constant 1 : i32
    %40:2 = scf.for %arg17 = %c0_i32_44 to %39 step %c1_i32_46 iter_args(%arg18 = %36, %arg19 = %38) -> (vector<8x32xf32>, vector<8x32xf32>)  : i32 {
      %51 = arith.index_cast %arg17 : i32 to index
      %c0_66 = arith.constant 0 : index
      %c0_67 = arith.constant 0 : index
      %52 = vector.load %arg13[%51, %c0_66, %c0_67] : memref<16x8x128xf32, #tpu.memory_space<vmem>>, vector<1x8x128xf32>
      %53 = vector.shape_cast %52 : vector<1x8x128xf32> to vector<8x128xf32>
      %cst_68 = arith.constant dense<0.000000e+00> : vector<8x128xf32>
      %54 = tpu.matmul %arg18, %27, %cst_68 {dimension_numbers = #tpu.dot_dimension_numbers<[1], [0], [0], [1], [0, 0, 1, 1], [], []>} : vector<8x32xf32>, vector<32x128xf32>, vector<8x128xf32> -> vector<8x128xf32>
      %55 = arith.addf %53, %54 : vector<8x128xf32>
      %56 = vector.extract_strided_slice %55 {offsets = [0, 0], sizes = [8, 32], strides = [1, 1]} : vector<8x128xf32> to vector<8x32xf32>
      %57 = arith.negf %56 : vector<8x32xf32>
      %58 = math.exp %57 : vector<8x32xf32>
      %cst_69 = arith.constant 1.000000e+00 : f32
      %59 = vector.broadcast %cst_69 : f32 to vector<8x32xf32>
      %60 = arith.addf %59, %58 : vector<8x32xf32>
      %61 = arith.divf %59, %60 : vector<8x32xf32>
      %62 = vector.extract_strided_slice %55 {offsets = [0, 32], sizes = [8, 32], strides = [1, 1]} : vector<8x128xf32> to vector<8x32xf32>
      %63 = arith.negf %62 : vector<8x32xf32>
      %64 = math.exp %63 : vector<8x32xf32>
      %cst_70 = arith.constant 1.000000e+00 : f32
      %65 = vector.broadcast %cst_70 : f32 to vector<8x32xf32>
      %66 = arith.addf %65, %64 : vector<8x32xf32>
      %67 = arith.divf %65, %66 : vector<8x32xf32>
      %68 = vector.extract_strided_slice %55 {offsets = [0, 64], sizes = [8, 32], strides = [1, 1]} : vector<8x128xf32> to vector<8x32xf32>
      %69 = math.tanh %68 : vector<8x32xf32>
      %70 = vector.extract_strided_slice %55 {offsets = [0, 96], sizes = [8, 32], strides = [1, 1]} : vector<8x128xf32> to vector<8x32xf32>
      %71 = arith.negf %70 : vector<8x32xf32>
      %72 = math.exp %71 : vector<8x32xf32>
      %cst_71 = arith.constant 1.000000e+00 : f32
      %73 = vector.broadcast %cst_71 : f32 to vector<8x32xf32>
      %74 = arith.addf %73, %72 : vector<8x32xf32>
      %75 = arith.divf %73, %74 : vector<8x32xf32>
      %76 = arith.mulf %67, %arg19 : vector<8x32xf32>
      %77 = arith.mulf %61, %69 : vector<8x32xf32>
      %78 = arith.addf %76, %77 : vector<8x32xf32>
      %79 = math.tanh %78 : vector<8x32xf32>
      %80 = arith.mulf %75, %79 : vector<8x32xf32>
      %81 = arith.index_cast %arg17 : i32 to index
      %c0_72 = arith.constant 0 : index
      %c0_73 = arith.constant 0 : index
      %82 = vector.load %arg3[%81, %c0_72, %c0_73] : memref<16x8x1xf32, #tpu.memory_space<vmem>>, vector<1x8x1xf32>
      %83 = vector.shape_cast %82 : vector<1x8x1xf32> to vector<8x1xf32>
      %cst_74 = arith.constant 5.000000e-01 : f32
      %84 = vector.broadcast %cst_74 : f32 to vector<8x1xf32>
      %85 = arith.cmpf ogt, %83, %84 : vector<8x1xf32>
      %cst_75 = arith.constant 0.000000e+00 : f32
      %86 = vector.shape_cast %85 : vector<8x1xi1> to vector<8x1xi1>
      %87 = vector.broadcast %86 : vector<8x1xi1> to vector<8x32xi1>
      %88 = vector.broadcast %cst_75 : f32 to vector<8x32xf32>
      %89 = arith.select %87, %80, %88 : vector<8x32xi1>, vector<8x32xf32>
      %90 = arith.index_cast %arg17 : i32 to index
      %c0_76 = arith.constant 0 : index
      %c0_77 = arith.constant 0 : index
      %91 = vector.load %arg10[%90, %c0_76, %c0_77] : memref<16x8x32xf32, #tpu.memory_space<vmem>>, vector<1x8x32xf32>
      %92 = vector.shape_cast %91 : vector<1x8x32xf32> to vector<8x32xf32>
      %93 = vector.shape_cast %89 : vector<8x32xf32> to vector<1x8x32xf32>
      tpu.vector_store %arg10[%90, %c0_76, %c0_77], %93 {strides = array<i32>} : memref<16x8x32xf32, #tpu.memory_space<vmem>>, vector<1x8x32xf32>,
      %94 = vector.shape_cast %85 : vector<8x1xi1> to vector<8x1xi1>
      %95 = vector.broadcast %94 : vector<8x1xi1> to vector<8x32xi1>
      %96 = arith.select %95, %80, %arg18 : vector<8x32xi1>, vector<8x32xf32>
      %97 = vector.shape_cast %85 : vector<8x1xi1> to vector<8x1xi1>
      %98 = vector.broadcast %97 : vector<8x1xi1> to vector<8x32xi1>
      %99 = arith.select %98, %78, %arg19 : vector<8x32xi1>, vector<8x32xf32>
      scf.yield %96, %99 : vector<8x32xf32>, vector<8x32xf32>
    }
    %c16_i32_47 = arith.constant 16 : i32
    %c1_48 = arith.constant 1 : index
    %c0_49 = arith.constant 0 : index
    %c0_50 = arith.constant 0 : index
    %41 = vector.load %arg15[%c1_48, %c0_49, %c0_50] : memref<2x8x32xf32, #tpu.memory_space<vmem>>, vector<1x8x32xf32>
    %42 = vector.shape_cast %41 : vector<1x8x32xf32> to vector<8x32xf32>
    %43 = vector.shape_cast %40#0 : vector<8x32xf32> to vector<1x8x32xf32>
    tpu.vector_store %arg15[%c1_48, %c0_49, %c0_50], %43 {strides = array<i32>} : memref<2x8x32xf32, #tpu.memory_space<vmem>>, vector<1x8x32xf32>,
    %c1_51 = arith.constant 1 : index
    %c0_52 = arith.constant 0 : index
    %c0_53 = arith.constant 0 : index
    %44 = vector.load %arg16[%c1_51, %c0_52, %c0_53] : memref<2x8x32xf32, #tpu.memory_space<vmem>>, vector<1x8x32xf32>
    %45 = vector.shape_cast %44 : vector<1x8x32xf32> to vector<8x32xf32>
    %46 = vector.shape_cast %40#1 : vector<8x32xf32> to vector<1x8x32xf32>
    tpu.vector_store %arg16[%c1_51, %c0_52, %c0_53], %46 {strides = array<i32>} : memref<2x8x32xf32, #tpu.memory_space<vmem>>, vector<1x8x32xf32>,
    %c0_54 = arith.constant 0 : index
    %c0_55 = arith.constant 0 : index
    %c0_56 = arith.constant 0 : index
    %47 = vector.load %arg15[%c0_54, %c0_55, %c0_56] : memref<2x8x32xf32, #tpu.memory_space<vmem>>, vector<2x8x32xf32>
    %c0_57 = arith.constant 0 : index
    %c0_58 = arith.constant 0 : index
    %c0_59 = arith.constant 0 : index
    %48 = vector.load %arg11[%c0_57, %c0_58, %c0_59] : memref<2x8x32xf32, #tpu.memory_space<vmem>>, vector<2x8x32xf32>
    tpu.vector_store %arg11[%c0_57, %c0_58, %c0_59], %47 {strides = array<i32>} : memref<2x8x32xf32, #tpu.memory_space<vmem>>, vector<2x8x32xf32>,
    %c0_60 = arith.constant 0 : index
    %c0_61 = arith.constant 0 : index
    %c0_62 = arith.constant 0 : index
    %49 = vector.load %arg16[%c0_60, %c0_61, %c0_62] : memref<2x8x32xf32, #tpu.memory_space<vmem>>, vector<2x8x32xf32>
    %c0_63 = arith.constant 0 : index
    %c0_64 = arith.constant 0 : index
    %c0_65 = arith.constant 0 : index
    %50 = vector.load %arg12[%c0_63, %c0_64, %c0_65] : memref<2x8x32xf32, #tpu.memory_space<vmem>>, vector<2x8x32xf32>
    tpu.vector_store %arg12[%c0_63, %c0_64, %c0_65], %49 {strides = array<i32>} : memref<2x8x32xf32, #tpu.memory_space<vmem>>, vector<2x8x32xf32>,
    return
  }
  func.func @transform_0(%arg0: i32, %arg1: i32) -> (i32, i32, i32) {
    %c0_i32 = arith.constant 0 : i32
    %c0_i32_0 = arith.constant 0 : i32
    return %arg1, %arg0, %c0_i32 : i32, i32, i32
  }
  func.func @transform_1(%arg0: i32, %arg1: i32) -> (i32, i32, i32) {
    %c0_i32 = arith.constant 0 : i32
    %c0_i32_0 = arith.constant 0 : i32
    return %arg1, %arg0, %c0_i32 : i32, i32, i32
  }
  func.func @transform_2(%arg0: i32, %arg1: i32) -> (i32, i32) {
    %c0_i32 = arith.constant 0 : i32
    %c0_i32_0 = arith.constant 0 : i32
    %c0_i32_1 = arith.constant 0 : i32
    return %c0_i32, %c0_i32_0 : i32, i32
  }
  func.func @transform_3(%arg0: i32, %arg1: i32) -> (i32, i32) {
    %c0_i32 = arith.constant 0 : i32
    %c0_i32_0 = arith.constant 0 : i32
    %c0_i32_1 = arith.constant 0 : i32
    return %c0_i32, %c0_i32_0 : i32, i32
  }
  func.func @transform_4(%arg0: i32, %arg1: i32) -> (i32, i32) {
    %c0_i32 = arith.constant 0 : i32
    %c0_i32_0 = arith.constant 0 : i32
    %c0_i32_1 = arith.constant 0 : i32
    return %c0_i32, %c0_i32_0 : i32, i32
  }
  func.func @transform_5(%arg0: i32, %arg1: i32) -> (i32, i32) {
    %c0_i32 = arith.constant 0 : i32
    %c0_i32_0 = arith.constant 0 : i32
    %c0_i32_1 = arith.constant 0 : i32
    return %c0_i32, %c0_i32_0 : i32, i32
  }
  func.func @transform_6(%arg0: i32, %arg1: i32) -> (i32, i32) {
    %c0_i32 = arith.constant 0 : i32
    %c0_i32_0 = arith.constant 0 : i32
    %c0_i32_1 = arith.constant 0 : i32
    return %c0_i32, %c0_i32_0 : i32, i32
  }
  func.func @transform_7(%arg0: i32, %arg1: i32) -> (i32, i32) {
    %c0_i32 = arith.constant 0 : i32
    %c0_i32_0 = arith.constant 0 : i32
    %c0_i32_1 = arith.constant 0 : i32
    return %c0_i32, %c0_i32_0 : i32, i32
  }
  func.func @transform_8(%arg0: i32, %arg1: i32) -> (i32, i32, i32) {
    %c0_i32 = arith.constant 0 : i32
    %c0_i32_0 = arith.constant 0 : i32
    return %arg1, %arg0, %c0_i32 : i32, i32, i32
  }
  func.func @transform_9(%arg0: i32, %arg1: i32) -> (i32, i32, i32) {
    %c0_i32 = arith.constant 0 : i32
    %c0_i32_0 = arith.constant 0 : i32
    %c0_i32_1 = arith.constant 0 : i32
    return %c0_i32, %arg0, %c0_i32_0 : i32, i32, i32
  }
  func.func @transform_10(%arg0: i32, %arg1: i32) -> (i32, i32, i32) {
    %c0_i32 = arith.constant 0 : i32
    %c0_i32_0 = arith.constant 0 : i32
    %c0_i32_1 = arith.constant 0 : i32
    return %c0_i32, %arg0, %c0_i32_0 : i32, i32, i32
  }
}

</mosaic_0001>

<llo_original>
// kernel: tpu_custom_call.1
$region0: #{tpu_custom_call.1}
  #allocation0 [shape = 'u32[]', space=smem, size = 0x4, offset = 0x4, fixed_abs, tag = 'smem constant byte address 0x4 - core index']
  #allocation1 [shape = 'u32[72,128]{1,0:T(1,128)}', space=vmem, size = 0x9000, scoped, tag = 'internal scratch']
  #allocation2 [shape = 'f32[16,8,128]{2,1,0:T(8,128)}', space=vmem, size = 0x10000, scoped, tag = 'scratch operand']
  #allocation3 [shape = 'f32[16,8,32]{2,1,0:T(8,128)}', space=vmem, size = 0x10000, scoped, tag = 'scratch operand']
  #allocation4 [shape = 'f32[2,8,32]{2,1,0:T(8,128)}', space=vmem, size = 0x2000, scoped, tag = 'scratch operand']
  #allocation5 [shape = 'f32[2,8,32]{2,1,0:T(8,128)}', space=vmem, size = 0x2000, scoped, tag = 'scratch operand']
  %s0 = inlined_call_operand.vmem [shape: f32[16,8,16], index: 0, kind: input, shape index: {}]
  %s1 = inlined_call_operand.vmem [shape: f32[16,8,1], index: 1, kind: input, shape index: {}]
  %s2 = inlined_call_operand.hbm [shape: f32[16,128], index: 2, kind: input, shape index: {}]
  %s3 = inlined_call_operand.hbm [shape: f32[32,128], index: 3, kind: input, shape index: {}]
  %s4 = inlined_call_operand.vmem [shape: f32[1,128], index: 4, kind: input, shape index: {}]
  %s5 = inlined_call_operand.hbm [shape: f32[32,128], index: 5, kind: input, shape index: {}]
  %s6 = inlined_call_operand.hbm [shape: f32[32,128], index: 6, kind: input, shape index: {}]
  %s7 = inlined_call_operand.vmem [shape: f32[1,128], index: 7, kind: input, shape index: {}]
  %s8 = inlined_call_operand.hbm [shape: f32[16,8,32], index: 8, kind: output, shape index: {0}]
  %s9 = inlined_call_operand.hbm [shape: f32[2,8,32], index: 9, kind: output, shape index: {1}]
  %s10 = inlined_call_operand.hbm [shape: f32[2,8,32], index: 10, kind: output, shape index: {2}]
  %11 = xla_tuple %s8, %s9, %s10
  %s12 = sld [smem:[#allocation0]]
  $region92: #{tpu_custom_call.1} parent=0
    _
  %s14 = ssub.s32 1, %s12
  %s15 = scalar_select 0, %s14, %s12
  $region1: #{tpu_custom_call.1} parent=0
    #allocation6 [shape = 'u8[8192]{0}', space=vmem, size = 0x2000, scoped, tag = 'input window, operand 2, single buffered']
    #allocation7 [shape = 's32[1]{0}', space=sflag, size = 0x4, scoped, tag = 'scoped memory for tpu_custom_call.1']
    #allocation8 [shape = 's32[1]{0}', space=sflag, size = 0x4, scoped, tag = 'scoped memory for tpu_custom_call.1']
    #allocation9 [shape = 'u8[16384]{0}', space=vmem, size = 0x4000, scoped, tag = 'input window, operand 3, single buffered']
    #allocation10 [shape = 's32[1]{0}', space=sflag, size = 0x4, scoped, tag = 'scoped memory for tpu_custom_call.1']
    #allocation11 [shape = 'u8[16384]{0}', space=vmem, size = 0x4000, scoped, tag = 'input window, operand 5, single buffered']
    #allocation12 [shape = 'u8[16384]{0}', space=vmem, size = 0x4000, scoped, tag = 'input window, operand 6, single buffered']
    #allocation13 [shape = 's32[1]{0}', space=sflag, size = 0x4, scoped, tag = 'scoped memory for tpu_custom_call.1']
    #allocation14 [shape = 'u8[65536]{0}', space=vmem, size = 0x10000, scoped, tag = 'output window, operand 0, single buffered']
    #allocation15 [shape = 'u8[8192]{0}', space=vmem, size = 0x2000, scoped, tag = 'output window, operand 1, single buffered']
    #allocation16 [shape = 's32[1]{0}', space=sflag, size = 0x4, scoped, tag = 'scoped memory for tpu_custom_call.1']
    #allocation17 [shape = 'u8[8192]{0}', space=vmem, size = 0x2000, scoped, tag = 'output window, operand 2, single buffered']
    %16 = vsyncpa [#allocation7], 0
    %17 = vsyncpa [#allocation10], 0
    %18 = vsyncpa [#allocation13], 0
    %19 = vsyncpa [#allocation8], 0
    %20 = vsyncpa [#allocation16], 0
    // Predicated region
    $region2: #{tpu_custom_call.1} parent=1 // pred_check
      _
    $region3: #{tpu_custom_call.1} parent=1 // pred_check_branch
      %22 = sbr.rel (0) target = $region5
    $region4: #{tpu_custom_call.1} parent=1 // pred_region
      _
    $region5: #{tpu_custom_call.1} parent=1 // pred_fallthru
      _
    // Predicated region
    $region6: #{tpu_custom_call.1} parent=1 // pred_check
      _
    $region7: #{tpu_custom_call.1} parent=1 // pred_check_branch
      %24 = sbr.rel (0) target = $region9
    $region8: #{tpu_custom_call.1} parent=1 // pred_region
      _
    $region9: #{tpu_custom_call.1} parent=1 // pred_fallthru
      _
    // Predicated region
    $region10: #{tpu_custom_call.1} parent=1 // pred_check
      _
    $region11: #{tpu_custom_call.1} parent=1 // pred_check_branch
      %26 = sbr.rel (0) target = $region13
    $region12: #{tpu_custom_call.1} parent=1 // pred_region
      %28 = vsyncadd [#allocation7], 0
      %s29 = sshll.u32 %s2, 4
      %s30 = int_to_ptr.hbm [resolvable:$true] %s29
      %s31 = sshll.u32 [#allocation6], 4
      %s32 = int_to_ptr.vmem [resolvable:$true] %s31
      %37 = dma.hbm_to_vmem [thread:$0]  %s30, 256, %s32, [#allocation7], 128, 128, 8
    $region13: #{tpu_custom_call.1} parent=1 // pred_fallthru
      _
    // Predicated region
    $region14: #{tpu_custom_call.1} parent=1 // pred_check
      _
    $region15: #{tpu_custom_call.1} parent=1 // pred_check_branch
      %39 = sbr.rel (0) target = $region17
    $region16: #{tpu_custom_call.1} parent=1 // pred_region
      %41 = vsyncadd [#allocation10], 0
      %s42 = sshll.u32 %s3, 4
      %s43 = int_to_ptr.hbm [resolvable:$true] %s42
      %s44 = sshll.u32 [#allocation9], 4
      %s45 = int_to_ptr.vmem [resolvable:$true] %s44
      %50 = dma.hbm_to_vmem [thread:$0]  %s43, 512, %s45, [#allocation10], 128, 128, 8
    $region17: #{tpu_custom_call.1} parent=1 // pred_fallthru
      _
    // Predicated region
    $region18: #{tpu_custom_call.1} parent=1 // pred_check
      _
    $region19: #{tpu_custom_call.1} parent=1 // pred_check_branch
      %52 = sbr.rel (0) target = $region21
    $region20: #{tpu_custom_call.1} parent=1 // pred_region
      _
    $region21: #{tpu_custom_call.1} parent=1 // pred_fallthru
      _
    // Predicated region
    $region22: #{tpu_custom_call.1} parent=1 // pred_check
      _
    $region23: #{tpu_custom_call.1} parent=1 // pred_check_branch
      %54 = sbr.rel (0) target = $region25
    $region24: #{tpu_custom_call.1} parent=1 // pred_region
      %56 = vsyncadd [#allocation10], 0
      %s57 = sshll.u32 %s5, 4
      %s58 = int_to_ptr.hbm [resolvable:$true] %s57
      %s59 = sshll.u32 [#allocation11], 4
      %s60 = int_to_ptr.vmem [resolvable:$true] %s59
      %65 = dma.hbm_to_vmem [thread:$0]  %s58, 512, %s60, [#allocation10], 128, 128, 8
    $region25: #{tpu_custom_call.1} parent=1 // pred_fallthru
      _
    // Predicated region
    $region26: #{tpu_custom_call.1} parent=1 // pred_check
      _
    $region27: #{tpu_custom_call.1} parent=1 // pred_check_branch
      %67 = sbr.rel (0) target = $region29
    $region28: #{tpu_custom_call.1} parent=1 // pred_region
      %69 = vsyncadd [#allocation13], 0
      %s70 = sshll.u32 %s6, 4
      %s71 = int_to_ptr.hbm [resolvable:$true] %s70
      %s72 = sshll.u32 [#allocation12], 4
      %s73 = int_to_ptr.vmem [resolvable:$true] %s72
      %78 = dma.hbm_to_vmem [thread:$0]  %s71, 512, %s73, [#allocation13], 128, 128, 8
    $region29: #{tpu_custom_call.1} parent=1 // pred_fallthru
      _
    // Predicated region
    $region30: #{tpu_custom_call.1} parent=1 // pred_check
      _
    $region31: #{tpu_custom_call.1} parent=1 // pred_check_branch
      %80 = sbr.rel (0) target = $region33
    $region32: #{tpu_custom_call.1} parent=1 // pred_region
      _
    $region33: #{tpu_custom_call.1} parent=1 // pred_fallthru
      _
    // Predicated region
    $region34: #{tpu_custom_call.1} parent=1 // pred_check
      _
    $region35: #{tpu_custom_call.1} parent=1 // pred_check_branch
      %82 = sbr.rel (0) target = $region37
    $region36: #{tpu_custom_call.1} parent=1 // pred_region
      %84 = dma.done [#allocation7], 256
    $region37: #{tpu_custom_call.1} parent=1 // pred_fallthru
      _
    // Predicated region
    $region38: #{tpu_custom_call.1} parent=1 // pred_check
      _
    $region39: #{tpu_custom_call.1} parent=1 // pred_check_branch
      %86 = sbr.rel (0) target = $region41
    $region40: #{tpu_custom_call.1} parent=1 // pred_region
      %88 = dma.done [#allocation10], 512
    $region41: #{tpu_custom_call.1} parent=1 // pred_fallthru
      _
    // Predicated region
    $region42: #{tpu_custom_call.1} parent=1 // pred_check
      _
    $region43: #{tpu_custom_call.1} parent=1 // pred_check_branch
      %90 = sbr.rel (0) target = $region45
    $region44: #{tpu_custom_call.1} parent=1 // pred_region
      %92 = dma.done [#allocation10], 512
    $region45: #{tpu_custom_call.1} parent=1 // pred_fallthru
      _
    // Predicated region
    $region46: #{tpu_custom_call.1} parent=1 // pred_check
      _
    $region47: #{tpu_custom_call.1} parent=1 // pred_check_branch
      %94 = sbr.rel (0) target = $region49
    $region48: #{tpu_custom_call.1} parent=1 // pred_region
      %96 = dma.done [#allocation13], 512
    $region49: #{tpu_custom_call.1} parent=1 // pred_fallthru
      _
    %p97 = scmp.eq.s32.totalorder 0, 0
    // Predicated region
    $region50: #{tpu_custom_call.1} parent=1 // pred_check
      %p98 = pneg %p97
    $region51: #{tpu_custom_call.1} parent=1 // pred_check_branch
      %100 = sbr.rel (%p98) target = $region53
    $region52: #{tpu_custom_call.1} parent=1 // pred_region
      %vm101 = vcmask 261120
      %102 = vst.msk [vmem:[#allocation4] sm:$0xff] %vm101, 0.0
      %103 = vst.msk [vmem:[#allocation4 + $0x8] sm:$0xff] %vm101, 0.0
      %104 = vst.msk [vmem:[#allocation5] sm:$0xff] %vm101, 0.0
      %105 = vst.msk [vmem:[#allocation5 + $0x8] sm:$0xff] %vm101, 0.0
    $region53: #{tpu_custom_call.1} parent=1 // pred_fallthru
      _
    %v106 = vld [vmem:[%s0] sm:$0xff]
    %v107 = vld [vmem:[%s0 + $0x8] sm:$0xff]
    %v108 = vld [vmem:[%s0 + $0x10] sm:$0xff]
    %v109 = vld [vmem:[%s0 + $0x18] sm:$0xff]
    %v110 = vld [vmem:[%s0 + $0x20] sm:$0xff]
    %v111 = vld [vmem:[%s0 + $0x28] sm:$0xff]
    %v112 = vld [vmem:[%s0 + $0x30] sm:$0xff]
    %v113 = vld [vmem:[%s0 + $0x38] sm:$0xff]
    %v114 = vld [vmem:[%s0 + $0x40] sm:$0xff]
    %v115 = vld [vmem:[%s0 + $0x48] sm:$0xff]
    %v116 = vld [vmem:[%s0 + $0x50] sm:$0xff]
    %v117 = vld [vmem:[%s0 + $0x58] sm:$0xff]
    %v118 = vld [vmem:[%s0 + $0x60] sm:$0xff]
    %v119 = vld [vmem:[%s0 + $0x68] sm:$0xff]
    %v120 = vld [vmem:[%s0 + $0x70] sm:$0xff]
    %v121 = vld [vmem:[%s0 + $0x78] sm:$0xff]
    %v122 = vld [vmem:[#allocation6] sm:$0xff]
    %v123 = vld [vmem:[#allocation6 + $0x8] sm:$0xff]
    %v124 = vld [vmem:[#allocation9] sm:$0xff]
    %v125 = vld [vmem:[#allocation9 + $0x8] sm:$0xff]
    %v126 = vld [vmem:[#allocation9 + $0x10] sm:$0xff]
    %v127 = vld [vmem:[#allocation9 + $0x18] sm:$0xff]
    %v128 = vld [vmem:[%s4] sm:$0x1]
    %v130 = vperm.slane %v128, 0
    %vm132 = vcmask 130048
    %v134 = vsel %vm132, %v106, 0
    %v137 = vsel %vm132, %v107, 0
    %v140 = vsel %vm132, %v108, 0
    %v143 = vsel %vm132, %v109, 0
    %v146 = vsel %vm132, %v110, 0
    %v149 = vsel %vm132, %v111, 0
    %v152 = vsel %vm132, %v112, 0
    %v155 = vsel %vm132, %v113, 0
    %v158 = vsel %vm132, %v114, 0
    %v161 = vsel %vm132, %v115, 0
    %v164 = vsel %vm132, %v116, 0
    %v167 = vsel %vm132, %v117, 0
    %v170 = vsel %vm132, %v118, 0
    %v173 = vsel %vm132, %v119, 0
    %v176 = vsel %vm132, %v120, 0
    %v179 = vsel %vm132, %v121, 0
    %181 = vmatpush.msra.mxu0 0.0
    %182 = vmatpush.msra.mxu0 0.0
    %183 = vmatpush.msra.mxu0 0.0
    %184 = vmatpush.msra.mxu0 0.0
    %185 = vmatpush.msra.mxu0 0.0
    %186 = vmatpush.msra.mxu0 0.0
    %187 = vmatpush.msra.mxu0 0.0
    %188 = vmatpush.msra.mxu0 0.0
    %189 = vmatpush.msra.mxu0 0.0
    %190 = vmatpush.msra.mxu0 0.0
    %191 = vmatpush.msra.mxu0 0.0
    %192 = vmatpush.msra.mxu0 0.0
    %193 = vmatpush.msra.mxu0 0.0
    %194 = vmatpush.msra.mxu0 0.0
    %195 = vmatpush.msra.mxu0 %v123
    %196 = vmatpush.msra.mxu0 %v122
    %197 = vmatmul.f32.gmra.mxu0 %v134
    %v198 = vpop.f32.mrf.mxu0
    %v199 = vadd.f32 %v130, %v198
    %200 = vmatmul.f32.gmra.mxu0 %v137
    %v201 = vpop.f32.mrf.mxu0
    %v202 = vadd.f32 %v130, %v201
    %203 = vmatmul.f32.gmra.mxu0 %v140
    %v204 = vpop.f32.mrf.mxu0
    %v205 = vadd.f32 %v130, %v204
    %206 = vmatmul.f32.gmra.mxu0 %v143
    %v207 = vpop.f32.mrf.mxu0
    %v208 = vadd.f32 %v130, %v207
    %209 = vmatmul.f32.gmra.mxu0 %v146
    %v210 = vpop.f32.mrf.mxu0
    %v211 = vadd.f32 %v130, %v210
    %212 = vmatmul.f32.gmra.mxu0 %v149
    %v213 = vpop.f32.mrf.mxu0
    %v214 = vadd.f32 %v130, %v213
    %215 = vmatmul.f32.gmra.mxu0 %v152
    %v216 = vpop.f32.mrf.mxu0
    %v217 = vadd.f32 %v130, %v216
    %218 = vmatmul.f32.gmra.mxu0 %v155
    %v219 = vpop.f32.mrf.mxu0
    %v220 = vadd.f32 %v130, %v219
    %221 = vmatmul.f32.gmra.mxu0 %v158
    %v222 = vpop.f32.mrf.mxu0
    %v223 = vadd.f32 %v130, %v222
    %224 = vmatmul.f32.gmra.mxu0 %v161
    %v225 = vpop.f32.mrf.mxu0
    %v226 = vadd.f32 %v130, %v225
    %227 = vmatmul.f32.gmra.mxu0 %v164
    %v228 = vpop.f32.mrf.mxu0
    %v229 = vadd.f32 %v130, %v228
    %230 = vmatmul.f32.gmra.mxu0 %v167
    %v231 = vpop.f32.mrf.mxu0
    %v232 = vadd.f32 %v130, %v231
    %233 = vmatmul.f32.gmra.mxu0 %v170
    %v234 = vpop.f32.mrf.mxu0
    %v235 = vadd.f32 %v130, %v234
    %236 = vmatmul.f32.gmra.mxu0 %v173
    %v237 = vpop.f32.mrf.mxu0
    %v238 = vadd.f32 %v130, %v237
    %239 = vmatmul.f32.gmra.mxu0 %v176
    %v240 = vpop.f32.mrf.mxu0
    %v241 = vadd.f32 %v130, %v240
    %242 = vmatmul.f32.gmra.mxu0 %v179
    %v243 = vpop.f32.mrf.mxu0
    %v244 = vadd.f32 %v130, %v243
    %245 = vdwg.mxu0
    %246 = vst [vmem:[#allocation2] sm:$0xff] %v199
    %247 = vst [vmem:[#allocation2 + $0x8] sm:$0xff] %v202
    %248 = vst [vmem:[#allocation2 + $0x10] sm:$0xff] %v205
    %249 = vst [vmem:[#allocation2 + $0x18] sm:$0xff] %v208
    %250 = vst [vmem:[#allocation2 + $0x20] sm:$0xff] %v211
    %251 = vst [vmem:[#allocation2 + $0x28] sm:$0xff] %v214
    %252 = vst [vmem:[#allocation2 + $0x30] sm:$0xff] %v217
    %253 = vst [vmem:[#allocation2 + $0x38] sm:$0xff] %v220
    %254 = vst [vmem:[#allocation2 + $0x40] sm:$0xff] %v223
    %255 = vst [vmem:[#allocation2 + $0x48] sm:$0xff] %v226
    %256 = vst [vmem:[#allocation2 + $0x50] sm:$0xff] %v229
    %257 = vst [vmem:[#allocation2 + $0x58] sm:$0xff] %v232
    %258 = vst [vmem:[#allocation2 + $0x60] sm:$0xff] %v235
    %259 = vst [vmem:[#allocation2 + $0x68] sm:$0xff] %v238
    %260 = vst [vmem:[#allocation2 + $0x70] sm:$0xff] %v241
    %261 = vst [vmem:[#allocation2 + $0x78] sm:$0xff] %v244
    %v262 = vld [vmem:[#allocation4] sm:$0xff]
    %v263 = vld [vmem:[#allocation5] sm:$0xff]
    loop: start=0, step=1, limit=16
    $region54: #{tpu_custom_call.1} parent=1 // loop_pre_header
      _
    $region55: #{tpu_custom_call.1} parent=1 // loop_header
      %s265 = sphi 0, %s269
      %p266 = scmp.ge.s32.totalorder %s265, 16
      %v270 = vphi %v262, %v363
      %v271 = vphi %v263, %v367
    $region56: #{tpu_custom_call.1} parent=1 // loop_header_branch
      %268 = sbr.rel (%p266) target = $region60
    $region57: #{tpu_custom_call.1} parent=1 // loop_body
      %s272 = smul.u32 %s265, 8
      %s273 = scalar_lea.vmem [#allocation2], %s272
      %v274 = vld [vmem:[%s273] sm:$0xff]
      %vm275 = vcmask 261120
      %v277 = vsel %vm275, %v270, 0
      %279 = vmatpush.msra.mxu0 0.0
      %280 = vmatpush.msra.mxu0 0.0
      %281 = vmatpush.msra.mxu0 0.0
      %282 = vmatpush.msra.mxu0 0.0
      %283 = vmatpush.msra.mxu0 0.0
      %284 = vmatpush.msra.mxu0 0.0
      %285 = vmatpush.msra.mxu0 0.0
      %286 = vmatpush.msra.mxu0 0.0
      %287 = vmatpush.msra.mxu0 0.0
      %288 = vmatpush.msra.mxu0 0.0
      %289 = vmatpush.msra.mxu0 0.0
      %290 = vmatpush.msra.mxu0 0.0
      %291 = vmatpush.msra.mxu0 %v127
      %292 = vmatpush.msra.mxu0 %v126
      %293 = vmatpush.msra.mxu0 %v125
      %294 = vmatpush.msra.mxu0 %v124
      %295 = vmatmul.f32.gmra.mxu0 %v277
      %v296 = vpop.f32.mrf.mxu0
      %v297 = vadd.f32 0.0, %v296
      %298 = vdwg.mxu0
      %v299 = vadd.f32 %v274, %v297
      %v300 = vxor.u32 %v299, 2147483648
      %v301 = vmul.f32 %v300, 1.442695
      %v302 = vpow.pop %v301
      %v303 = vadd.f32 %v302, 1.0
      %v304 = vrcp.pop %v303
      %v305 = vmul.f32 %v303, %v304
      %v306 = vsub.f32 1.0, %v305
      %v307 = vmul.f32 %v304, %v306
      %v308 = vadd.f32 %v304, %v307
      %vm309 = vweird.f32 %v303
      %vm310 = vweird.f32 %v304
      %vm311 = vmor %vm309, %vm310
      %v312 = vsel %vm311, %v304, %v308
      %v313 = vand.u32 2147483647, %v303
      %vm314 = vcmp.eq.f32.partialorder %v313, 8.507059e+37
      %v315 = vand.u32 %v303, 2147483648
      %v316 = vor.u32 1.1754944e-38, %v315
      %v317 = vsel %vm314, %v316, %v312
      %v318 = vmul.f32 1.0, %v317
      %v319 = vtanh.pop %v299
      %321 = vrot.lane.b32.xlu0 %v271, 32
      %v322 = vpop.permute.xlu0 %321
      %v324 = vmul.f32 %v318, %v322
      %326 = vrot.lane.b32.xlu0 %v319, 64
      %v327 = vpop.permute.xlu0 %326
      %v329 = vmul.f32 %v318, %v327
      %331 = vrot.lane.b32.xlu0 %v329, 32
      %v332 = vpop.permute.xlu0 %331
      %v334 = vadd.f32 %v324, %v332
      %v335 = vtanh.pop %v334
      %337 = vrot.lane.b32.xlu0 %v335, 64
      %v338 = vpop.permute.xlu0 %337
      %v340 = vmul.f32 %v318, %v338
      %s341 = scalar_lea.vmem %s1, %s272
      %v342 = vld [vmem:[%s341] sm:$0xff]
      %vm343 = vcmp.gt.f32.partialorder %v342, 0.5
      %v344 = vsel %vm343, 1, 0
      %345 = vset.pattern.permute.xlu0 0
      %346 = vperm.xlu0 %345, %v344
      %v347 = vpop.permute.xlu0 %346
      %vm348 = vcmp.eq.s32.totalorder %v347, 1
      %v349 = vsel %vm348, %v340, 0.0
      %351 = vrot.lane.b32.xlu0 %v349, 32
      %v352 = vpop.permute.xlu0 %351
      %s354 = scalar_lea.vmem [#allocation3], %s272
      %355 = vst.msk [vmem:[%s354] sm:$0xff] %vm275, %v352
      %356 = vrot.lane.b32.xlu0 %v270, 96
      %v357 = vpop.permute.xlu0 %356
      %v359 = vsel %vm348, %v340, %v357
      %v360 = vsel %vm348, %v334, %v322
      %362 = vrot.lane.b32.xlu0 %v359, 32
      %v363 = vpop.permute.xlu0 %362
      %366 = vrot.lane.b32.xlu0 %v360, 96
      %v367 = vpop.permute.xlu0 %366
    $region58: #{tpu_custom_call.1} parent=1 // loop_footer
      %s269 = sadd.s32 1, %s265
    $region59: #{tpu_custom_call.1} parent=1 // loop_footer_branch
      %264 = sbr.rel target = $region55
    $region60: #{tpu_custom_call.1} parent=1 // loop_exit
      _
    %vm369 = vcmask 261120
    %370 = vst.msk [vmem:[#allocation4] sm:$0xff] %vm369, %v270
    %371 = vst.msk [vmem:[#allocation5] sm:$0xff] %vm369, %v271
    %v372 = vld [vmem:[#allocation3] sm:$0xff]
    %v373 = vld [vmem:[#allocation3 + $0x8] sm:$0xff]
    %v374 = vld [vmem:[#allocation3 + $0x10] sm:$0xff]
    %v375 = vld [vmem:[#allocation3 + $0x18] sm:$0xff]
    %v376 = vld [vmem:[#allocation3 + $0x20] sm:$0xff]
    %v377 = vld [vmem:[#allocation3 + $0x28] sm:$0xff]
    %v378 = vld [vmem:[#allocation3 + $0x30] sm:$0xff]
    %v379 = vld [vmem:[#allocation3 + $0x38] sm:$0xff]
    %v380 = vld [vmem:[#allocation3 + $0x40] sm:$0xff]
    %v381 = vld [vmem:[#allocation3 + $0x48] sm:$0xff]
    %v382 = vld [vmem:[#allocation3 + $0x50] sm:$0xff]
    %v383 = vld [vmem:[#allocation3 + $0x58] sm:$0xff]
    %v384 = vld [vmem:[#allocation3 + $0x60] sm:$0xff]
    %v385 = vld [vmem:[#allocation3 + $0x68] sm:$0xff]
    %v386 = vld [vmem:[#allocation3 + $0x70] sm:$0xff]
    %v387 = vld [vmem:[#allocation3 + $0x78] sm:$0xff]
    %v388 = vld [vmem:[#allocation11] sm:$0xff]
    %v389 = vld [vmem:[#allocation11 + $0x8] sm:$0xff]
    %v390 = vld [vmem:[#allocation11 + $0x10] sm:$0xff]
    %v391 = vld [vmem:[#allocation11 + $0x18] sm:$0xff]
    %v392 = vld [vmem:[#allocation12] sm:$0xff]
    %v393 = vld [vmem:[#allocation12 + $0x8] sm:$0xff]
    %v394 = vld [vmem:[#allocation12 + $0x10] sm:$0xff]
    %v395 = vld [vmem:[#allocation12 + $0x18] sm:$0xff]
    %v396 = vld [vmem:[%s7] sm:$0x1]
    %v398 = vperm.slane %v396, 0
    %v401 = vsel %vm369, %v372, 0
    %v404 = vsel %vm369, %v373, 0
    %v407 = vsel %vm369, %v374, 0
    %v410 = vsel %vm369, %v375, 0
    %v413 = vsel %vm369, %v376, 0
    %v416 = vsel %vm369, %v377, 0
    %v419 = vsel %vm369, %v378, 0
    %v422 = vsel %vm369, %v379, 0
    %v425 = vsel %vm369, %v380, 0
    %v428 = vsel %vm369, %v381, 0
    %v431 = vsel %vm369, %v382, 0
    %v434 = vsel %vm369, %v383, 0
    %v437 = vsel %vm369, %v384, 0
    %v440 = vsel %vm369, %v385, 0
    %v443 = vsel %vm369, %v386, 0
    %v446 = vsel %vm369, %v387, 0
    %448 = vmatpush.msra.mxu0 0.0
    %449 = vmatpush.msra.mxu0 0.0
    %450 = vmatpush.msra.mxu0 0.0
    %451 = vmatpush.msra.mxu0 0.0
    %452 = vmatpush.msra.mxu0 0.0
    %453 = vmatpush.msra.mxu0 0.0
    %454 = vmatpush.msra.mxu0 0.0
    %455 = vmatpush.msra.mxu0 0.0
    %456 = vmatpush.msra.mxu0 0.0
    %457 = vmatpush.msra.mxu0 0.0
    %458 = vmatpush.msra.mxu0 0.0
    %459 = vmatpush.msra.mxu0 0.0
    %460 = vmatpush.msra.mxu0 %v391
    %461 = vmatpush.msra.mxu0 %v390
    %462 = vmatpush.msra.mxu0 %v389
    %463 = vmatpush.msra.mxu0 %v388
    %464 = vmatmul.f32.gmra.mxu0 %v401
    %v465 = vpop.f32.mrf.mxu0
    %v466 = vadd.f32 %v398, %v465
    %467 = vmatmul.f32.gmra.mxu0 %v404
    %v468 = vpop.f32.mrf.mxu0
    %v469 = vadd.f32 %v398, %v468
    %470 = vmatmul.f32.gmra.mxu0 %v407
    %v471 = vpop.f32.mrf.mxu0
    %v472 = vadd.f32 %v398, %v471
    %473 = vmatmul.f32.gmra.mxu0 %v410
    %v474 = vpop.f32.mrf.mxu0
    %v475 = vadd.f32 %v398, %v474
    %476 = vmatmul.f32.gmra.mxu0 %v413
    %v477 = vpop.f32.mrf.mxu0
    %v478 = vadd.f32 %v398, %v477
    %479 = vmatmul.f32.gmra.mxu0 %v416
    %v480 = vpop.f32.mrf.mxu0
    %v481 = vadd.f32 %v398, %v480
    %482 = vmatmul.f32.gmra.mxu0 %v419
    %v483 = vpop.f32.mrf.mxu0
    %v484 = vadd.f32 %v398, %v483
    %485 = vmatmul.f32.gmra.mxu0 %v422
    %v486 = vpop.f32.mrf.mxu0
    %v487 = vadd.f32 %v398, %v486
    %488 = vmatmul.f32.gmra.mxu0 %v425
    %v489 = vpop.f32.mrf.mxu0
    %v490 = vadd.f32 %v398, %v489
    %491 = vmatmul.f32.gmra.mxu0 %v428
    %v492 = vpop.f32.mrf.mxu0
    %v493 = vadd.f32 %v398, %v492
    %494 = vmatmul.f32.gmra.mxu0 %v431
    %v495 = vpop.f32.mrf.mxu0
    %v496 = vadd.f32 %v398, %v495
    %497 = vmatmul.f32.gmra.mxu0 %v434
    %v498 = vpop.f32.mrf.mxu0
    %v499 = vadd.f32 %v398, %v498
    %500 = vmatmul.f32.gmra.mxu0 %v437
    %v501 = vpop.f32.mrf.mxu0
    %v502 = vadd.f32 %v398, %v501
    %503 = vmatmul.f32.gmra.mxu0 %v440
    %v504 = vpop.f32.mrf.mxu0
    %v505 = vadd.f32 %v398, %v504
    %506 = vmatmul.f32.gmra.mxu0 %v443
    %v507 = vpop.f32.mrf.mxu0
    %v508 = vadd.f32 %v398, %v507
    %509 = vmatmul.f32.gmra.mxu0 %v446
    %v510 = vpop.f32.mrf.mxu0
    %v511 = vadd.f32 %v398, %v510
    %512 = vdwg.mxu0
    %513 = vst [vmem:[#allocation2] sm:$0xff] %v466
    %514 = vst [vmem:[#allocation2 + $0x8] sm:$0xff] %v469
    %515 = vst [vmem:[#allocation2 + $0x10] sm:$0xff] %v472
    %516 = vst [vmem:[#allocation2 + $0x18] sm:$0xff] %v475
    %517 = vst [vmem:[#allocation2 + $0x20] sm:$0xff] %v478
    %518 = vst [vmem:[#allocation2 + $0x28] sm:$0xff] %v481
    %519 = vst [vmem:[#allocation2 + $0x30] sm:$0xff] %v484
    %520 = vst [vmem:[#allocation2 + $0x38] sm:$0xff] %v487
    %521 = vst [vmem:[#allocation2 + $0x40] sm:$0xff] %v490
    %522 = vst [vmem:[#allocation2 + $0x48] sm:$0xff] %v493
    %523 = vst [vmem:[#allocation2 + $0x50] sm:$0xff] %v496
    %524 = vst [vmem:[#allocation2 + $0x58] sm:$0xff] %v499
    %525 = vst [vmem:[#allocation2 + $0x60] sm:$0xff] %v502
    %526 = vst [vmem:[#allocation2 + $0x68] sm:$0xff] %v505
    %527 = vst [vmem:[#allocation2 + $0x70] sm:$0xff] %v508
    %528 = vst [vmem:[#allocation2 + $0x78] sm:$0xff] %v511
    %s529 = scalar_lea.vmem [#allocation4], 8
    %v530 = vld [vmem:[%s529] sm:$0xff]
    %s531 = scalar_lea.vmem [#allocation5], 8
    %v532 = vld [vmem:[%s531] sm:$0xff]
    loop: start=0, step=1, limit=16
    $region61: #{tpu_custom_call.1} parent=1 // loop_pre_header
      _
    $region62: #{tpu_custom_call.1} parent=1 // loop_header
      %s534 = sphi 0, %s538
      %p535 = scmp.ge.s32.totalorder %s534, 16
      %v539 = vphi %v530, %v631
      %v540 = vphi %v532, %v635
    $region63: #{tpu_custom_call.1} parent=1 // loop_header_branch
      %537 = sbr.rel (%p535) target = $region67
    $region64: #{tpu_custom_call.1} parent=1 // loop_body
      %s541 = smul.u32 %s534, 8
      %s542 = scalar_lea.vmem [#allocation2], %s541
      %v543 = vld [vmem:[%s542] sm:$0xff]
      %v545 = vsel %vm369, %v539, 0
      %547 = vmatpush.msra.mxu0 0.0
      %548 = vmatpush.msra.mxu0 0.0
      %549 = vmatpush.msra.mxu0 0.0
      %550 = vmatpush.msra.mxu0 0.0
      %551 = vmatpush.msra.mxu0 0.0
      %552 = vmatpush.msra.mxu0 0.0
      %553 = vmatpush.msra.mxu0 0.0
      %554 = vmatpush.msra.mxu0 0.0
      %555 = vmatpush.msra.mxu0 0.0
      %556 = vmatpush.msra.mxu0 0.0
      %557 = vmatpush.msra.mxu0 0.0
      %558 = vmatpush.msra.mxu0 0.0
      %559 = vmatpush.msra.mxu0 %v395
      %560 = vmatpush.msra.mxu0 %v394
      %561 = vmatpush.msra.mxu0 %v393
      %562 = vmatpush.msra.mxu0 %v392
      %563 = vmatmul.f32.gmra.mxu0 %v545
      %v564 = vpop.f32.mrf.mxu0
      %v565 = vadd.f32 0.0, %v564
      %566 = vdwg.mxu0
      %v567 = vadd.f32 %v543, %v565
      %v568 = vxor.u32 %v567, 2147483648
      %v569 = vmul.f32 %v568, 1.442695
      %v570 = vpow.pop %v569
      %v571 = vadd.f32 %v570, 1.0
      %v572 = vrcp.pop %v571
      %v573 = vmul.f32 %v571, %v572
      %v574 = vsub.f32 1.0, %v573
      %v575 = vmul.f32 %v572, %v574
      %v576 = vadd.f32 %v572, %v575
      %vm577 = vweird.f32 %v571
      %vm578 = vweird.f32 %v572
      %vm579 = vmor %vm577, %vm578
      %v580 = vsel %vm579, %v572, %v576
      %v581 = vand.u32 2147483647, %v571
      %vm582 = vcmp.eq.f32.partialorder %v581, 8.507059e+37
      %v583 = vand.u32 %v571, 2147483648
      %v584 = vor.u32 1.1754944e-38, %v583
      %v585 = vsel %vm582, %v584, %v580
      %v586 = vmul.f32 1.0, %v585
      %v587 = vtanh.pop %v567
      %589 = vrot.lane.b32.xlu0 %v540, 32
      %v590 = vpop.permute.xlu0 %589
      %v592 = vmul.f32 %v586, %v590
      %594 = vrot.lane.b32.xlu0 %v587, 64
      %v595 = vpop.permute.xlu0 %594
      %v597 = vmul.f32 %v586, %v595
      %599 = vrot.lane.b32.xlu0 %v597, 32
      %v600 = vpop.permute.xlu0 %599
      %v602 = vadd.f32 %v592, %v600
      %v603 = vtanh.pop %v602
      %605 = vrot.lane.b32.xlu0 %v603, 64
      %v606 = vpop.permute.xlu0 %605
      %v608 = vmul.f32 %v586, %v606
      %s609 = scalar_lea.vmem %s1, %s541
      %v610 = vld [vmem:[%s609] sm:$0xff]
      %vm611 = vcmp.gt.f32.partialorder %v610, 0.5
      %v612 = vsel %vm611, 1, 0
      %613 = vset.pattern.permute.xlu0 0
      %614 = vperm.xlu0 %613, %v612
      %v615 = vpop.permute.xlu0 %614
      %vm616 = vcmp.eq.s32.totalorder %v615, 1
      %v617 = vsel %vm616, %v608, 0.0
      %619 = vrot.lane.b32.xlu0 %v617, 32
      %v620 = vpop.permute.xlu0 %619
      %s622 = scalar_lea.vmem [#allocation14], %s541
      %623 = vst.msk [vmem:[%s622] sm:$0xff] %vm369, %v620
      %624 = vrot.lane.b32.xlu0 %v539, 96
      %v625 = vpop.permute.xlu0 %624
      %v627 = vsel %vm616, %v608, %v625
      %v628 = vsel %vm616, %v602, %v590
      %630 = vrot.lane.b32.xlu0 %v627, 32
      %v631 = vpop.permute.xlu0 %630
      %634 = vrot.lane.b32.xlu0 %v628, 96
      %v635 = vpop.permute.xlu0 %634
    $region65: #{tpu_custom_call.1} parent=1 // loop_footer
      %s538 = sadd.s32 1, %s534
    $region66: #{tpu_custom_call.1} parent=1 // loop_footer_branch
      %533 = sbr.rel target = $region62
    $region67: #{tpu_custom_call.1} parent=1 // loop_exit
      _
    %637 = vst.msk [vmem:[%s529] sm:$0xff] %vm369, %v539
    %638 = vst.msk [vmem:[%s531] sm:$0xff] %vm369, %v540
    %v639 = vld [vmem:[#allocation4] sm:$0xff]
    %v640 = vld [vmem:[#allocation4 + $0x8] sm:$0xff]
    %641 = vst.msk [vmem:[#allocation15] sm:$0xff] %vm369, %v639
    %642 = vst.msk [vmem:[#allocation15 + $0x8] sm:$0xff] %vm369, %v640
    %v643 = vld [vmem:[#allocation5] sm:$0xff]
    %v644 = vld [vmem:[#allocation5 + $0x8] sm:$0xff]
    %645 = vst.msk [vmem:[#allocation17] sm:$0xff] %vm369, %v643
    %646 = vst.msk [vmem:[#allocation17 + $0x8] sm:$0xff] %vm369, %v644
    // Predicated region
    $region68: #{tpu_custom_call.1} parent=1 // pred_check
      _
    $region69: #{tpu_custom_call.1} parent=1 // pred_check_branch
      %648 = sbr.rel (0) target = $region71
    $region70: #{tpu_custom_call.1} parent=1 // pred_region
      %650 = vsyncadd [#allocation8], 0
      %s651 = sshll.u32 [#allocation14], 4
      %s652 = int_to_ptr.vmem [resolvable:$true] %s651
      %s653 = sshll.u32 %s8, 4
      %s654 = int_to_ptr.hbm [resolvable:$true] %s653
      %659 = dma.vmem_to_hbm [thread:$0]  %s652, 2048, %s654, [#allocation8], 128, 128, 8
    $region71: #{tpu_custom_call.1} parent=1 // pred_fallthru
      _
    // Predicated region
    $region72: #{tpu_custom_call.1} parent=1 // pred_check
      _
    $region73: #{tpu_custom_call.1} parent=1 // pred_check_branch
      %661 = sbr.rel (0) target = $region75
    $region74: #{tpu_custom_call.1} parent=1 // pred_region
      %663 = vsyncadd [#allocation16], 0
      %s664 = sshll.u32 [#allocation15], 4
      %s665 = int_to_ptr.vmem [resolvable:$true] %s664
      %s666 = sshll.u32 %s9, 4
      %s667 = int_to_ptr.hbm [resolvable:$true] %s666
      %672 = dma.vmem_to_hbm [thread:$0]  %s665, 256, %s667, [#allocation16], 128, 128, 8
    $region75: #{tpu_custom_call.1} parent=1 // pred_fallthru
      _
    // Predicated region
    $region76: #{tpu_custom_call.1} parent=1 // pred_check
      _
    $region77: #{tpu_custom_call.1} parent=1 // pred_check_branch
      %674 = sbr.rel (0) target = $region79
    $region78: #{tpu_custom_call.1} parent=1 // pred_region
      %676 = vsyncadd [#allocation16], 0
      %s677 = sshll.u32 [#allocation17], 4
      %s678 = int_to_ptr.vmem [resolvable:$true] %s677
      %s679 = sshll.u32 %s10, 4
      %s680 = int_to_ptr.hbm [resolvable:$true] %s679
      %685 = dma.vmem_to_hbm [thread:$0]  %s678, 256, %s680, [#allocation16], 128, 128, 8
    $region79: #{tpu_custom_call.1} parent=1 // pred_fallthru
      _
    // Predicated region
    $region80: #{tpu_custom_call.1} parent=1 // pred_check
      _
    $region81: #{tpu_custom_call.1} parent=1 // pred_check_branch
      %687 = sbr.rel (0) target = $region83
    $region82: #{tpu_custom_call.1} parent=1 // pred_region
      %689 = dma.done [#allocation8], 2048
    $region83: #{tpu_custom_call.1} parent=1 // pred_fallthru
      _
    // Predicated region
    $region84: #{tpu_custom_call.1} parent=1 // pred_check
      _
    $region85: #{tpu_custom_call.1} parent=1 // pred_check_branch
      %691 = sbr.rel (0) target = $region87
    $region86: #{tpu_custom_call.1} parent=1 // pred_region
      %693 = dma.done [#allocation16], 256
    $region87: #{tpu_custom_call.1} parent=1 // pred_fallthru
      _
    // Predicated region
    $region88: #{tpu_custom_call.1} parent=1 // pred_check
      _
    $region89: #{tpu_custom_call.1} parent=1 // pred_check_branch
      %695 = sbr.rel (0) target = $region91
    $region90: #{tpu_custom_call.1} parent=1 // pred_region
      %697 = dma.done [#allocation16], 256
    $region91: #{tpu_custom_call.1} parent=1 // pred_fallthru
      _
    %698 = vsyncpa [#allocation7], 1
    %699 = vsyncpa [#allocation10], 1
    %700 = vsyncpa [#allocation13], 1
    %701 = vsyncpa [#allocation8], 1
    %702 = vsyncpa [#allocation16], 1

</llo_original>
